<compile_context>
chip_gen: v5e
topology: v5e:2x2
jax: 0.10.0
libtpu: 0.0.40
codegen_flags: <defaults>
</compile_context>

<pallas_src>
import jax
import jax.numpy as jnp
from jax.experimental import pallas as pl
from jax.experimental.pallas import tpu as pltpu


def _sigmoid(z):
    # One EUP op (tanh); mathematically identical to 1/(1+exp(-z)).
    return 0.5 * (jnp.tanh(0.5 * z) + 1.0)


def xor_kernel(p_ref, x_ref, o_ref):
    """p_ref: SMEM f32[9] packed params (torch layout:
         [W1[0,0], W1[0,1], W1[1,0], W1[1,1], b1[0], b1[1],
          W2[0,0], W2[0,1], b2[0]]).
       x_ref: VMEM (2, block_b)  -- feature-major, batch on lanes.
       o_ref: VMEM (1, block_b)  -- lane-dense output."""
    x = x_ref[...]                       # (2, block_b) f32
    x0 = x[0:1, :]                       # (1, block_b)
    x1 = x[1:2, :]

    # fc1 (x @ W1.T + b1) as VPU broadcast-FMAs, then sigmoid (EUP).
    h0 = _sigmoid(x0 * p_ref[0] + x1 * p_ref[1] + p_ref[4])
    h1 = _sigmoid(x0 * p_ref[2] + x1 * p_ref[3] + p_ref[5])

    # fc2 (h @ W2.T + b2), then sigmoid.
    y = h0 * p_ref[6] + h1 * p_ref[7] + p_ref[8]
    o_ref[...] = _sigmoid(y)


def xor_forward(x, params):
    """x: (B, 2) f32. params: flat f32[9] in torch layout. Returns (B, 1)."""
    B = x.shape[0]

    # Lane-align the batch and pick a lane-dense block size.
    Bp = max(128, -(-B // 128) * 128)
    block_b = min(Bp, 2048)
    Bp = -(-Bp // block_b) * block_b      # grid divides evenly

    x_t = jnp.zeros((2, Bp), jnp.float32).at[:, :B].set(x.T.astype(jnp.float32))

    out = pl.pallas_call(
        xor_kernel,
        out_shape=jax.ShapeDtypeStruct((1, Bp), jnp.float32),
        grid=(Bp // block_b,),
        in_specs=[
            pl.BlockSpec(memory_space=pltpu.SMEM),               # packed params
            pl.BlockSpec((2, block_b), lambda i: (0, i)),        # x (batch on lanes)
        ],
        out_specs=pl.BlockSpec((1, block_b), lambda i: (0, i)),
        compiler_params=pltpu.CompilerParams(
            dimension_semantics=("parallel",)),
    )(params, x_t)

    return out[:, :B].T                                          # (B, 1)


def init_params(key):
    """Torch nn.Linear default init (U[-1/sqrt(fan_in), +]) in torch layout."""
    k1, k2, k3, k4 = jax.random.split(key, 4)
    bound = 1.0 / jnp.sqrt(2.0)           # fan_in = 2 for both layers
    w1 = jax.random.uniform(k1, (2, 2), jnp.float32, -bound, bound)  # (out, in)
    b1 = jax.random.uniform(k2, (2,), jnp.float32, -bound, bound)
    w2 = jax.random.uniform(k3, (1, 2), jnp.float32, -bound, bound)  # (out, in)
    b2 = jax.random.uniform(k4, (1,), jnp.float32, -bound, bound)
    return w1, b1, w2, b2


def pack_params(w1, b1, w2, b2):
    return jnp.concatenate(
        [w1.reshape(-1), b1.reshape(-1), w2.reshape(-1), b2.reshape(-1)]
    ).astype(jnp.float32)                 # (9,)


def reference_forward(x, w1, b1, w2, b2):
    h = jax.nn.sigmoid(x @ w1.T + b1)
    return jax.nn.sigmoid(h @ w2.T + b2)


if __name__ == "__main__":
    key = jax.random.PRNGKey(0)
    _, kp = jax.random.split(key)

    # XOR truth table tiled to batch = 128 (one full lane width).
    truth = jnp.array([[0.0, 0.0], [0.0, 1.0], [1.0, 0.0], [1.0, 1.0]],
                      dtype=jnp.float32)
    x = jnp.tile(truth, (32, 1))          # (128, 2)

    w1, b1, w2, b2 = init_params(kp)
    params = pack_params(w1, b1, w2, b2)

    out = xor_forward(x, params)
    jax.block_until_ready(out)

    ref = reference_forward(x, w1, b1, w2, b2)
    assert out.shape == (128, 1)
    assert jnp.allclose(out, ref, atol=1e-5, rtol=1e-5)

    print("KERNEL_OK")
</pallas_src>

<mosaic_0001>
module attributes {stable_mosaic.version = 11 : i64} {
  func.func @xor_kernel(%arg0: i32, %arg1: memref<9xf32, #tpu.memory_space<smem>>, %arg2: memref<2x128xf32, #tpu.memory_space<vmem>>, %arg3: memref<1x128xf32, #tpu.memory_space<vmem>>) attributes {dimension_semantics = [#tpu.dimension_semantics<parallel>], iteration_bounds = array<i64: 1>, scalar_prefetch = 0 : i64, scratch_operands = 0 : i64, tpu.core_type = #tpu.core_type<tc>, window_params = [{transform_indices = @transform_0, window_bounds = array<i64: 9>}, {transform_indices = @transform_1, window_bounds = array<i64: 2, 128>}, {transform_indices = @transform_2, window_bounds = array<i64: 1, 128>}]} {
    %c0 = arith.constant 0 : index
    %c0_0 = arith.constant 0 : index
    %0 = vector.load %arg2[%c0, %c0_0] : memref<2x128xf32, #tpu.memory_space<vmem>>, vector<2x128xf32>
    %1 = vector.extract_strided_slice %0 {offsets = [0, 0], sizes = [1, 128], strides = [1, 1]} : vector<2x128xf32> to vector<1x128xf32>
    %2 = vector.extract_strided_slice %0 {offsets = [1, 0], sizes = [1, 128], strides = [1, 1]} : vector<2x128xf32> to vector<1x128xf32>
    %c0_1 = arith.constant 0 : index
    %3 = memref.load %arg1[%c0_1] : memref<9xf32, #tpu.memory_space<smem>>
    %4 = vector.broadcast %3 : f32 to vector<1x128xf32>
    %5 = arith.mulf %1, %4 : vector<1x128xf32>
    %c1 = arith.constant 1 : index
    %6 = memref.load %arg1[%c1] : memref<9xf32, #tpu.memory_space<smem>>
    %7 = vector.broadcast %6 : f32 to vector<1x128xf32>
    %8 = arith.mulf %2, %7 : vector<1x128xf32>
    %9 = arith.addf %5, %8 : vector<1x128xf32>
    %c4 = arith.constant 4 : index
    %10 = memref.load %arg1[%c4] : memref<9xf32, #tpu.memory_space<smem>>
    %11 = vector.broadcast %10 : f32 to vector<1x128xf32>
    %12 = arith.addf %9, %11 : vector<1x128xf32>
    %cst = arith.constant 5.000000e-01 : f32
    %13 = vector.broadcast %cst : f32 to vector<1x128xf32>
    %14 = arith.mulf %13, %12 : vector<1x128xf32>
    %15 = math.tanh %14 : vector<1x128xf32>
    %cst_2 = arith.constant 1.000000e+00 : f32
    %16 = vector.broadcast %cst_2 : f32 to vector<1x128xf32>
    %17 = arith.addf %15, %16 : vector<1x128xf32>
    %cst_3 = arith.constant 5.000000e-01 : f32
    %18 = vector.broadcast %cst_3 : f32 to vector<1x128xf32>
    %19 = arith.mulf %18, %17 : vector<1x128xf32>
    %c2 = arith.constant 2 : index
    %20 = memref.load %arg1[%c2] : memref<9xf32, #tpu.memory_space<smem>>
    %21 = vector.broadcast %20 : f32 to vector<1x128xf32>
    %22 = arith.mulf %1, %21 : vector<1x128xf32>
    %c3 = arith.constant 3 : index
    %23 = memref.load %arg1[%c3] : memref<9xf32, #tpu.memory_space<smem>>
    %24 = vector.broadcast %23 : f32 to vector<1x128xf32>
    %25 = arith.mulf %2, %24 : vector<1x128xf32>
    %26 = arith.addf %22, %25 : vector<1x128xf32>
    %c5 = arith.constant 5 : index
    %27 = memref.load %arg1[%c5] : memref<9xf32, #tpu.memory_space<smem>>
    %28 = vector.broadcast %27 : f32 to vector<1x128xf32>
    %29 = arith.addf %26, %28 : vector<1x128xf32>
    %cst_4 = arith.constant 5.000000e-01 : f32
    %30 = vector.broadcast %cst_4 : f32 to vector<1x128xf32>
    %31 = arith.mulf %30, %29 : vector<1x128xf32>
    %32 = math.tanh %31 : vector<1x128xf32>
    %cst_5 = arith.constant 1.000000e+00 : f32
    %33 = vector.broadcast %cst_5 : f32 to vector<1x128xf32>
    %34 = arith.addf %32, %33 : vector<1x128xf32>
    %cst_6 = arith.constant 5.000000e-01 : f32
    %35 = vector.broadcast %cst_6 : f32 to vector<1x128xf32>
    %36 = arith.mulf %35, %34 : vector<1x128xf32>
    %c6 = arith.constant 6 : index
    %37 = memref.load %arg1[%c6] : memref<9xf32, #tpu.memory_space<smem>>
    %38 = vector.broadcast %37 : f32 to vector<1x128xf32>
    %39 = arith.mulf %19, %38 : vector<1x128xf32>
    %c7 = arith.constant 7 : index
    %40 = memref.load %arg1[%c7] : memref<9xf32, #tpu.memory_space<smem>>
    %41 = vector.broadcast %40 : f32 to vector<1x128xf32>
    %42 = arith.mulf %36, %41 : vector<1x128xf32>
    %43 = arith.addf %39, %42 : vector<1x128xf32>
    %c8 = arith.constant 8 : index
    %44 = memref.load %arg1[%c8] : memref<9xf32, #tpu.memory_space<smem>>
    %45 = vector.broadcast %44 : f32 to vector<1x128xf32>
    %46 = arith.addf %43, %45 : vector<1x128xf32>
    %cst_7 = arith.constant 5.000000e-01 : f32
    %47 = vector.broadcast %cst_7 : f32 to vector<1x128xf32>
    %48 = arith.mulf %47, %46 : vector<1x128xf32>
    %49 = math.tanh %48 : vector<1x128xf32>
    %cst_8 = arith.constant 1.000000e+00 : f32
    %50 = vector.broadcast %cst_8 : f32 to vector<1x128xf32>
    %51 = arith.addf %49, %50 : vector<1x128xf32>
    %cst_9 = arith.constant 5.000000e-01 : f32
    %52 = vector.broadcast %cst_9 : f32 to vector<1x128xf32>
    %53 = arith.mulf %52, %51 : vector<1x128xf32>
    %c0_10 = arith.constant 0 : index
    %c0_11 = arith.constant 0 : index
    %54 = vector.load %arg3[%c0_10, %c0_11] : memref<1x128xf32, #tpu.memory_space<vmem>>, vector<1x128xf32>
    tpu.vector_store %arg3[%c0_10, %c0_11], %53 {strides = array<i32>} : memref<1x128xf32, #tpu.memory_space<vmem>>, vector<1x128xf32>,
    return
  }
  func.func @transform_0(%arg0: i32) -> i32 {
    %c0_i32 = arith.constant 0 : i32
    %c0_i32_0 = arith.constant 0 : i32
    return %c0_i32 : i32
  }
  func.func @transform_1(%arg0: i32) -> (i32, i32) {
    %c0_i32 = arith.constant 0 : i32
    %c0_i32_0 = arith.constant 0 : i32
    return %c0_i32, %arg0 : i32, i32
  }
  func.func @transform_2(%arg0: i32) -> (i32, i32) {
    %c0_i32 = arith.constant 0 : i32
    %c0_i32_0 = arith.constant 0 : i32
    return %c0_i32, %arg0 : i32, i32
  }
}

</mosaic_0001>

<llo_original>
// kernel: tpu_custom_call.1
$region0: #{tpu_custom_call.1}
  #allocation0 [shape = 'u32[]', space=smem, size = 0x4, offset = 0x4, fixed_abs, tag = 'smem constant byte address 0x4 - core index']
  #allocation1 [shape = 'u32[72,128]{1,0:T(1,128)}', space=vmem, size = 0x9000, scoped, tag = 'internal scratch']
  %s0 = inlined_call_operand.hbm [shape: f32[9], index: 0, kind: input, shape index: {}]
  %s1 = inlined_call_operand.hbm [shape: f32[2,128], index: 1, kind: input, shape index: {}]
  %s2 = inlined_call_operand.hbm [shape: f32[1,128], index: 2, kind: output, shape index: {}]
  %s3 = sld [smem:[#allocation0]]
  $region26: #{tpu_custom_call.1} parent=0
    _
  %s5 = ssub.s32 1, %s3
  %s6 = scalar_select 0, %s5, %s3
  $region1: #{tpu_custom_call.1} parent=0
    #allocation2 [shape = 'u8[512]{0}', space=smem, size = 0x200, scoped, tag = 'input window, operand 0, single buffered']
    #allocation3 [shape = 's32[1]{0}', space=sflag, size = 0x4, scoped, tag = 'scoped memory for tpu_custom_call.1']
    #allocation4 [shape = 's32[1]{0}', space=sflag, size = 0x4, scoped, tag = 'scoped memory for tpu_custom_call.1']
    #allocation5 [shape = 's32[1]{0}', space=sflag, size = 0x4, scoped, tag = 'scoped memory for tpu_custom_call.1']
    #allocation6 [shape = 'u8[1024]{0}', space=vmem, size = 0x400, scoped, tag = 'input window, operand 1, single buffered']
    #allocation7 [shape = 'u8[512]{0}', space=vmem, size = 0x400, scoped, tag = 'output window, operand 0, single buffered']
    %7 = vsyncpa [#allocation5], 0
    %8 = vsyncpa [#allocation3], 0
    %9 = vsyncpa [#allocation4], 0
    // Predicated region
    $region2: #{tpu_custom_call.1} parent=1 // pred_check
      _
    $region3: #{tpu_custom_call.1} parent=1 // pred_check_branch
      %11 = sbr.rel (0) target = $region5
    $region4: #{tpu_custom_call.1} parent=1 // pred_region
      %13 = vsyncadd [#allocation5], 0
      %s15 = sshll.u32 %s0, 4
      %s16 = int_to_ptr.hbm [resolvable:$true] %s15
      %18 = dma.hbm_to_smem %s16, 16, [#allocation2], [#allocation5]
    $region5: #{tpu_custom_call.1} parent=1 // pred_fallthru
      _
    // Predicated region
    $region6: #{tpu_custom_call.1} parent=1 // pred_check
      _
    $region7: #{tpu_custom_call.1} parent=1 // pred_check_branch
      %20 = sbr.rel (0) target = $region9
    $region8: #{tpu_custom_call.1} parent=1 // pred_region
      %22 = vsyncadd [#allocation3], 0
      %s24 = sshll.u32 %s1, 4
      %s25 = int_to_ptr.hbm [resolvable:$true] %s24
      %s26 = sshll.u32 [#allocation6], 4
      %s27 = int_to_ptr.vmem [resolvable:$true] %s26
      %29 = dma.hbm_to_vmem [thread:$0]  %s25, 32, %s27, [#allocation3]
    $region9: #{tpu_custom_call.1} parent=1 // pred_fallthru
      _
    // Predicated region
    $region10: #{tpu_custom_call.1} parent=1 // pred_check
      _
    $region11: #{tpu_custom_call.1} parent=1 // pred_check_branch
      %31 = sbr.rel (0) target = $region13
    $region12: #{tpu_custom_call.1} parent=1 // pred_region
      %33 = dma.done [#allocation5], 16
    $region13: #{tpu_custom_call.1} parent=1 // pred_fallthru
      _
    // Predicated region
    $region14: #{tpu_custom_call.1} parent=1 // pred_check
      _
    $region15: #{tpu_custom_call.1} parent=1 // pred_check_branch
      %35 = sbr.rel (0) target = $region17
    $region16: #{tpu_custom_call.1} parent=1 // pred_region
      %37 = dma.done [#allocation3], 32
    $region17: #{tpu_custom_call.1} parent=1 // pred_fallthru
      _
    %38 = sfence
    %v39 = vld [vmem:[#allocation6] sm:$0x3]
    %s40 = sld [smem:[#allocation2]]
    %v41 = vstv %s40
    %v42 = vmul.f32 %v39, %v41
    %s43 = sld [smem:[#allocation2 + $0x1]]
    %v44 = vstv %s43
    %v45 = vmul.f32 %v39, %v44
    %v47 = vrot.slane %v45, 1
    %v49 = vadd.f32 %v42, %v47
    %s50 = sld [smem:[#allocation2 + $0x4]]
    %v51 = vstv %s50
    %v52 = vadd.f32 %v49, %v51
    %v53 = vmul.f32 %v52, 0.5
    %v54 = vtanh.pop %v53
    %v55 = vadd.f32 %v54, 1.0
    %v56 = vmul.f32 %v55, 0.5
    %s57 = sld [smem:[#allocation2 + $0x2]]
    %v58 = vstv %s57
    %v59 = vmul.f32 %v39, %v58
    %s60 = sld [smem:[#allocation2 + $0x3]]
    %v61 = vstv %s60
    %v62 = vmul.f32 %v39, %v61
    %v64 = vrot.slane %v62, 1
    %v66 = vadd.f32 %v59, %v64
    %s67 = sld [smem:[#allocation2 + $0x5]]
    %v68 = vstv %s67
    %v69 = vadd.f32 %v66, %v68
    %v70 = vmul.f32 %v69, 0.5
    %v71 = vtanh.pop %v70
    %v72 = vadd.f32 %v71, 1.0
    %v73 = vmul.f32 %v72, 0.5
    %s74 = sld [smem:[#allocation2 + $0x6]]
    %v75 = vstv %s74
    %v76 = vmul.f32 %v56, %v75
    %s77 = sld [smem:[#allocation2 + $0x7]]
    %v78 = vstv %s77
    %v79 = vmul.f32 %v73, %v78
    %v80 = vadd.f32 %v76, %v79
    %s81 = sld [smem:[#allocation2 + $0x8]]
    %v82 = vstv %s81
    %v83 = vadd.f32 %v80, %v82
    %v84 = vmul.f32 %v83, 0.5
    %v85 = vtanh.pop %v84
    %v86 = vadd.f32 %v85, 1.0
    %v87 = vmul.f32 %v86, 0.5
    %88 = vst [vmem:[#allocation7] sm:$0x1] %v87
    // Predicated region
    $region18: #{tpu_custom_call.1} parent=1 // pred_check
      _
    $region19: #{tpu_custom_call.1} parent=1 // pred_check_branch
      %90 = sbr.rel (0) target = $region21
    $region20: #{tpu_custom_call.1} parent=1 // pred_region
      %92 = vsyncadd [#allocation4], 0
      %s94 = sshll.u32 [#allocation7], 4
      %s95 = int_to_ptr.vmem [resolvable:$true] %s94
      %s96 = sshll.u32 %s2, 4
      %s97 = int_to_ptr.hbm [resolvable:$true] %s96
      %99 = dma.vmem_to_hbm [thread:$0]  %s95, 16, %s97, [#allocation4]
    $region21: #{tpu_custom_call.1} parent=1 // pred_fallthru
      _
    // Predicated region
    $region22: #{tpu_custom_call.1} parent=1 // pred_check
      _
    $region23: #{tpu_custom_call.1} parent=1 // pred_check_branch
      %101 = sbr.rel (0) target = $region25
    $region24: #{tpu_custom_call.1} parent=1 // pred_region
      %103 = dma.done [#allocation4], 16
    $region25: #{tpu_custom_call.1} parent=1 // pred_fallthru
      _
    %104 = vsyncpa [#allocation3], 1
    %105 = vsyncpa [#allocation4], 1
    %106 = vsyncpa [#allocation5], 1

</llo_original>
